<compile_context>
chip_gen: v7x
topology: tpu7x:2x2x1
jax: 0.10.0
libtpu: 0.0.40
codegen_flags: <defaults>
</compile_context>

<pallas_src>
import functools

import jax
import jax.numpy as jnp
from jax.experimental import pallas as pl
from jax.experimental.pallas import tpu as pltpu

LANE = 128          # TPU lane width (last-dim alignment for the weight slab)
BF16_SUBLANE = 16   # bf16 packs 16 rows per vreg


def _round_up(n, m):
    return ((n + m - 1) // m) * m


def _cdiv(a, b):
    return (a + b - 1) // b


def _qnet_kernel(x_ref, w_ref, b_ref, o_ref, *, input_dims, n_actions):
    """Fused 3-layer MLP on one (TILE_B, input_dims) batch tile.

    x_ref : (TILE_B, input_dims) bf16   real-width inputs (no lane padding)
    w_ref : (3, D, D)            bf16   zero-padded, pre-transposed weights (in, out)
    b_ref : (3, D)               f32    zero-padded biases
    o_ref : (TILE_B, n_actions)  f32    real-width Q-values
    """
    x = x_ref[...]                                   # (tb, input_dims) bf16

    # fc1 + ReLU: only the real input rows of the padded weight slab are read.
    w1 = w_ref[0, :input_dims, :]                    # (input_dims, D) bf16
    h1 = jnp.dot(x, w1, preferred_element_type=jnp.float32) + b_ref[0:1, :]
    h1 = jnp.maximum(h1, 0.0).astype(jnp.bfloat16)

    # fc2 + ReLU
    h2 = jnp.dot(h1, w_ref[1], preferred_element_type=jnp.float32) + b_ref[1:2, :]
    h2 = jnp.maximum(h2, 0.0).astype(jnp.bfloat16)

    # fc3 (no activation); store only the real action columns.
    out = jnp.dot(h2, w_ref[2], preferred_element_type=jnp.float32) + b_ref[2:3, :]
    o_ref[...] = out[:, :n_actions].astype(o_ref.dtype)


def init_params(key, input_dims, hidden_dim1, hidden_dim2, n_actions):
    """nn.Linear default init: U(-1/sqrt(fan_in), +1/sqrt(fan_in)).
    Weights are stored pre-transposed as (in_features, out_features)."""
    keys = jax.random.split(key, 6)

    def linear(kw, kb, fan_in, fan_out):
        bound = 1.0 / jnp.sqrt(jnp.float32(fan_in))
        w = jax.random.uniform(kw, (fan_in, fan_out), jnp.float32, -bound, bound)
        b = jax.random.uniform(kb, (fan_out,), jnp.float32, -bound, bound)
        return w, b

    w1, b1 = linear(keys[0], keys[1], input_dims, hidden_dim1)
    w2, b2 = linear(keys[2], keys[3], hidden_dim1, hidden_dim2)
    w3, b3 = linear(keys[4], keys[5], hidden_dim2, n_actions)
    return {"w1": w1, "b1": b1, "w2": w2, "b2": b2, "w3": w3, "b3": b3}


def pack_params(params):
    """Pack the six per-layer arrays into one lane-dense bf16 weight slab and one
    f32 bias slab (single DMA descriptor each), zero-padded to a common D."""
    w1, b1, w2, b2, w3, b3 = (params["w1"], params["b1"], params["w2"],
                              params["b2"], params["w3"], params["b3"])
    dims = (w1.shape[0], w1.shape[1], w2.shape[1], w3.shape[1])
    D = _round_up(max(dims), LANE)

    def pad_w(w):
        return jnp.pad(w, ((0, D - w.shape[0]), (0, D - w.shape[1])))

    def pad_b(b):
        b = b.reshape(-1)
        return jnp.pad(b, (0, D - b.shape[0]))

    w_slab = jnp.stack([pad_w(w1), pad_w(w2), pad_w(w3)]).astype(jnp.bfloat16)
    b_slab = jnp.stack([pad_b(b1), pad_b(b2), pad_b(b3)]).astype(jnp.float32)
    return w_slab, b_slab, int(w1.shape[0]), int(w3.shape[1])


@functools.partial(jax.jit, static_argnames=("input_dims", "n_actions", "tile_b"))
def linear_qnet_forward(state, w_slab, b_slab, *, input_dims, n_actions, tile_b=4096):
    """state: (B, input_dims) f32.  Returns (B, n_actions) f32 Q-values."""
    B = state.shape[0]
    D = w_slab.shape[-1]
    assert state.shape[1] == input_dims

    # --- batch tiling ---------------------------------------------------------
    # Small batches: a single 16-row-aligned tile (bf16 packs 16 rows per vreg).
    # Large batches: an even number of equal tiles so v7x's two TensorCores get
    # balanced work under dimension_semantics=("parallel",).
    if B <= 512:
        n_tiles = 1
        tb = max(_round_up(B, BF16_SUBLANE), BF16_SUBLANE)
    else:
        n_tiles = 2 * _cdiv(B, 2 * tile_b)          # even step count >= 2
        tb = _round_up(_cdiv(B, n_tiles), BF16_SUBLANE)
    b_pad = tb * n_tiles

    # Only batch rows are padded; cast + pad fuse into one op under this jit.
    x = jnp.pad(state, ((0, b_pad - B), (0, 0))).astype(jnp.bfloat16)

    kernel = functools.partial(_qnet_kernel, input_dims=input_dims,
                               n_actions=n_actions)

    out = pl.pallas_call(
        kernel,
        out_shape=jax.ShapeDtypeStruct((b_pad, n_actions), jnp.float32),
        grid=(n_tiles,),
        in_specs=[
            # Real-width activation tile (double-buffered by the Pallas pipeline).
            pl.BlockSpec((tb, input_dims), lambda i: (i, 0)),
            # Weights / biases: constant block index -> VMEM-resident across steps.
            pl.BlockSpec((3, D, D), lambda i: (0, 0, 0)),
            pl.BlockSpec((3, D), lambda i: (0, 0)),
        ],
        out_specs=pl.BlockSpec((tb, n_actions), lambda i: (i, 0)),
        compiler_params=pltpu.CompilerParams(
            dimension_semantics=("parallel",),       # shard batch across TCs (v7x)
            vmem_limit_bytes=32 * 1024 * 1024,       # explicit, safe on v5e/v6e/v7x
        ),
    )(x, w_slab, b_slab)

    # Drop batch-row padding only (columns are already real-width).
    return out[:B, :]


def _reference_forward(state, w_slab, b_slab, input_dims, n_actions):
    """Pure-JAX reference mirroring the kernel numerics (bf16 operands, f32 accumulate)."""
    w = w_slab.astype(jnp.float32)
    x = state.astype(jnp.bfloat16).astype(jnp.float32)
    h1 = jnp.maximum(x @ w[0, :input_dims, :] + b_slab[0], 0.0)
    h1 = h1.astype(jnp.bfloat16).astype(jnp.float32)
    h2 = jnp.maximum(h1 @ w[1] + b_slab[1], 0.0)
    h2 = h2.astype(jnp.bfloat16).astype(jnp.float32)
    out = h2 @ w[2] + b_slab[2]
    return out[:, :n_actions]


if __name__ == "__main__":
    # Small shapes consistent with the module: batch=2, input=16, hidden=32/32, actions=4.
    batch, input_dims, hidden1, hidden2, n_actions = 2, 16, 32, 32, 4

    key = jax.random.PRNGKey(0)
    k_params, k_state, k_state2 = jax.random.split(key, 3)
    params = init_params(k_params, input_dims, hidden1, hidden2, n_actions)
    w_slab, b_slab, in_dims, n_act = pack_params(params)

    # Small (online-policy) batch.
    state = jax.random.normal(k_state, (batch, input_dims), jnp.float32)
    out = linear_qnet_forward(state, w_slab, b_slab,
                              input_dims=in_dims, n_actions=n_act)
    out = jax.block_until_ready(out)
    ref = _reference_forward(state, w_slab, b_slab, in_dims, n_act)
    assert out.shape == (batch, n_actions)
    assert jnp.allclose(out, ref, atol=1e-3, rtol=1e-3)

    # Multi-tile (replay-buffer style) batch: exercises grid > 1 with an even
    # number of steps and boundary batch padding.
    big_batch = 600
    state2 = jax.random.normal(k_state2, (big_batch, input_dims), jnp.float32)
    out2 = linear_qnet_forward(state2, w_slab, b_slab,
                               input_dims=in_dims, n_actions=n_act)
    out2 = jax.block_until_ready(out2)
    ref2 = _reference_forward(state2, w_slab, b_slab, in_dims, n_act)
    assert out2.shape == (big_batch, n_actions)
    assert jnp.allclose(out2, ref2, atol=1e-3, rtol=1e-3)

    print("KERNEL_OK")
</pallas_src>

<mosaic_0001>
module attributes {stable_mosaic.version = 11 : i64} {
  func.func @_qnet_kernel(%arg0: i32, %arg1: memref<16x16xbf16, #tpu.memory_space<vmem>>, %arg2: memref<3x128x128xbf16, #tpu.memory_space<vmem>>, %arg3: memref<3x128xf32, #tpu.memory_space<vmem>>, %arg4: memref<16x4xf32, #tpu.memory_space<vmem>>) attributes {dimension_semantics = [#tpu.dimension_semantics<parallel>], iteration_bounds = array<i64: 1>, scalar_prefetch = 0 : i64, scratch_operands = 0 : i64, tpu.core_type = #tpu.core_type<tc>, window_params = [{transform_indices = @transform_0, window_bounds = array<i64: 16, 16>}, {pipeline_mode = #tpu.pipeline_mode<synchronous>, transform_indices = @transform_1, window_bounds = array<i64: 3, 128, 128>}, {pipeline_mode = #tpu.pipeline_mode<synchronous>, transform_indices = @transform_2, window_bounds = array<i64: 3, 128>}, {transform_indices = @transform_3, window_bounds = array<i64: 16, 4>}]} {
    %c0 = arith.constant 0 : index
    %c0_0 = arith.constant 0 : index
    %0 = vector.load %arg1[%c0, %c0_0] : memref<16x16xbf16, #tpu.memory_space<vmem>>, vector<16x16xbf16>
    %c0_1 = arith.constant 0 : index
    %c0_2 = arith.constant 0 : index
    %c0_3 = arith.constant 0 : index
    %1 = vector.load %arg2[%c0_1, %c0_2, %c0_3] : memref<3x128x128xbf16, #tpu.memory_space<vmem>>, vector<1x16x128xbf16>
    %2 = vector.shape_cast %1 : vector<1x16x128xbf16> to vector<16x128xbf16>
    %cst = arith.constant dense<0.000000e+00> : vector<16x128xf32>
    %3 = tpu.matmul %0, %2, %cst {dimension_numbers = #tpu.dot_dimension_numbers<[1], [0], [0], [1], [0, 0, 1, 1], [], []>} : vector<16x16xbf16>, vector<16x128xbf16>, vector<16x128xf32> -> vector<16x128xf32>
    %c0_4 = arith.constant 0 : index
    %c0_5 = arith.constant 0 : index
    %4 = vector.load %arg3[%c0_4, %c0_5] : memref<3x128xf32, #tpu.memory_space<vmem>>, vector<1x128xf32>
    %5 = vector.broadcast %4 : vector<1x128xf32> to vector<16x128xf32>
    %6 = arith.addf %3, %5 : vector<16x128xf32>
    %cst_6 = arith.constant 0.000000e+00 : f32
    %7 = vector.broadcast %cst_6 : f32 to vector<16x128xf32>
    %8 = arith.maximumf %6, %7 : vector<16x128xf32>
    %9 = arith.truncf %8 : vector<16x128xf32> to vector<16x128xbf16>
    %c1 = arith.constant 1 : index
    %c0_7 = arith.constant 0 : index
    %c0_8 = arith.constant 0 : index
    %10 = vector.load %arg2[%c1, %c0_7, %c0_8] : memref<3x128x128xbf16, #tpu.memory_space<vmem>>, vector<1x128x128xbf16>
    %11 = vector.shape_cast %10 : vector<1x128x128xbf16> to vector<128x128xbf16>
    %cst_9 = arith.constant dense<0.000000e+00> : vector<16x128xf32>
    %12 = tpu.matmul %9, %11, %cst_9 {dimension_numbers = #tpu.dot_dimension_numbers<[1], [0], [0], [1], [0, 0, 1, 1], [], []>} : vector<16x128xbf16>, vector<128x128xbf16>, vector<16x128xf32> -> vector<16x128xf32>
    %c1_10 = arith.constant 1 : index
    %c0_11 = arith.constant 0 : index
    %13 = vector.load %arg3[%c1_10, %c0_11] : memref<3x128xf32, #tpu.memory_space<vmem>>, vector<1x128xf32>
    %14 = vector.broadcast %13 : vector<1x128xf32> to vector<16x128xf32>
    %15 = arith.addf %12, %14 : vector<16x128xf32>
    %cst_12 = arith.constant 0.000000e+00 : f32
    %16 = vector.broadcast %cst_12 : f32 to vector<16x128xf32>
    %17 = arith.maximumf %15, %16 : vector<16x128xf32>
    %18 = arith.truncf %17 : vector<16x128xf32> to vector<16x128xbf16>
    %c2 = arith.constant 2 : index
    %c0_13 = arith.constant 0 : index
    %c0_14 = arith.constant 0 : index
    %19 = vector.load %arg2[%c2, %c0_13, %c0_14] : memref<3x128x128xbf16, #tpu.memory_space<vmem>>, vector<1x128x128xbf16>
    %20 = vector.shape_cast %19 : vector<1x128x128xbf16> to vector<128x128xbf16>
    %cst_15 = arith.constant dense<0.000000e+00> : vector<16x128xf32>
    %21 = tpu.matmul %18, %20, %cst_15 {dimension_numbers = #tpu.dot_dimension_numbers<[1], [0], [0], [1], [0, 0, 1, 1], [], []>} : vector<16x128xbf16>, vector<128x128xbf16>, vector<16x128xf32> -> vector<16x128xf32>
    %c2_16 = arith.constant 2 : index
    %c0_17 = arith.constant 0 : index
    %22 = vector.load %arg3[%c2_16, %c0_17] : memref<3x128xf32, #tpu.memory_space<vmem>>, vector<1x128xf32>
    %23 = vector.broadcast %22 : vector<1x128xf32> to vector<16x128xf32>
    %24 = arith.addf %21, %23 : vector<16x128xf32>
    %25 = vector.extract_strided_slice %24 {offsets = [0, 0], sizes = [16, 4], strides = [1, 1]} : vector<16x128xf32> to vector<16x4xf32>
    %c0_18 = arith.constant 0 : index
    %c0_19 = arith.constant 0 : index
    %26 = vector.load %arg4[%c0_18, %c0_19] : memref<16x4xf32, #tpu.memory_space<vmem>>, vector<16x4xf32>
    tpu.vector_store %arg4[%c0_18, %c0_19], %25 {strides = array<i32>} : memref<16x4xf32, #tpu.memory_space<vmem>>, vector<16x4xf32>,
    return
  }
  func.func @transform_0(%arg0: i32) -> (i32, i32) {
    %c0_i32 = arith.constant 0 : i32
    %c0_i32_0 = arith.constant 0 : i32
    return %arg0, %c0_i32 : i32, i32
  }
  func.func @transform_1(%arg0: i32) -> (i32, i32, i32) {
    %c0_i32 = arith.constant 0 : i32
    %c0_i32_0 = arith.constant 0 : i32
    %c0_i32_1 = arith.constant 0 : i32
    %c0_i32_2 = arith.constant 0 : i32
    return %c0_i32, %c0_i32_0, %c0_i32_1 : i32, i32, i32
  }
  func.func @transform_2(%arg0: i32) -> (i32, i32) {
    %c0_i32 = arith.constant 0 : i32
    %c0_i32_0 = arith.constant 0 : i32
    %c0_i32_1 = arith.constant 0 : i32
    return %c0_i32, %c0_i32_0 : i32, i32
  }
  func.func @transform_3(%arg0: i32) -> (i32, i32) {
    %c0_i32 = arith.constant 0 : i32
    %c0_i32_0 = arith.constant 0 : i32
    return %arg0, %c0_i32 : i32, i32
  }
}

</mosaic_0001>

<llo_original>
// kernel: linear_qnet_forward.1
$region0: #{linear_qnet_forward.1}
  #allocation0 [shape = 'u32[]', space=smem, size = 0x4, offset = 0x4, fixed_abs, tag = 'smem constant byte address 0x4 - core index']
  #allocation1 [shape = 'u32[144,128]{1,0:T(1,128)}', space=vmem, size = 0x12000, scoped, tag = 'internal scratch']
  %s0 = inlined_call_operand.vmem [shape: bf16[16,16], index: 0, kind: input, shape index: {}]
  %s1 = inlined_call_operand.hbm [shape: bf16[3,128,128], index: 1, kind: input, shape index: {}]
  %s2 = inlined_call_operand.vmem [shape: f32[3,128], index: 2, kind: input, shape index: {}]
  %s3 = inlined_call_operand.vmem [shape: f32[16,4], index: 3, kind: output, shape index: {}]
  %s4 = sld [smem:[#allocation0]]
  $region26: #{linear_qnet_forward.1} parent=0
    _
  %s6 = ssub.s32 1, %s4
  %s7 = scalar_select 0, %s6, %s4
  $region1: #{linear_qnet_forward.1} parent=0
    #allocation2 [shape = 'u8[98304]{0}', space=vmem, size = 0x18000, scoped, tag = 'input window, operand 1, single buffered']
    #allocation3 [shape = 's32[1]{0}', space=sflag, size = 0x4, scoped, tag = 'scoped memory for linear_qnet_forward.1']
    %8 = vsyncpa [#allocation3], 0
    // Predicated region
    $region2: #{linear_qnet_forward.1} parent=1 // pred_check
      _
    $region3: #{linear_qnet_forward.1} parent=1 // pred_check_branch
      %10 = sbr.rel (0) target = $region5
    $region4: #{linear_qnet_forward.1} parent=1 // pred_region
      _
    $region5: #{linear_qnet_forward.1} parent=1 // pred_fallthru
      _
    // Predicated region
    $region6: #{linear_qnet_forward.1} parent=1 // pred_check
      _
    $region7: #{linear_qnet_forward.1} parent=1 // pred_check_branch
      %12 = sbr.rel (0) target = $region9
    $region8: #{linear_qnet_forward.1} parent=1 // pred_region
      %s14 = ssub.s32 3072, 3072
      %15 = vsyncadd [#allocation3], %s14
      %s16 = sshll.u32 [#allocation2], 4
      %s17 = int_to_ptr.vmem [resolvable:$true] %s16
      %22 = dma.hbm_to_vmem [thread:$0]  %s1, 3072, %s17, [#allocation3], 64, 64, 4
    $region9: #{linear_qnet_forward.1} parent=1 // pred_fallthru
      _
    // Predicated region
    $region10: #{linear_qnet_forward.1} parent=1 // pred_check
      _
    $region11: #{linear_qnet_forward.1} parent=1 // pred_check_branch
      %24 = sbr.rel (0) target = $region13
    $region12: #{linear_qnet_forward.1} parent=1 // pred_region
      _
    $region13: #{linear_qnet_forward.1} parent=1 // pred_fallthru
      _
    // Predicated region
    $region14: #{linear_qnet_forward.1} parent=1 // pred_check
      _
    $region15: #{linear_qnet_forward.1} parent=1 // pred_check_branch
      %26 = sbr.rel (0) target = $region17
    $region16: #{linear_qnet_forward.1} parent=1 // pred_region
      %27 = dma.done [#allocation3], 3072
    $region17: #{linear_qnet_forward.1} parent=1 // pred_fallthru
      _
    %v29 = vld [vmem:[%s0] sm:$0xf]
    %v30 = vld [vmem:[%s0 + $0x4] sm:$0xf]
    %v31 = vld [vmem:[#allocation2] sm:$0xf]
    %v32 = vld [vmem:[#allocation2 + $0x4] sm:$0xf]
    %v33 = vld [vmem:[%s2] sm:$0x1]
    %v34 = vlaneseq
    %v35 = vshrl.u32 %v34, 7
    %v36 = vsub.s32 0, %v35
    %v37 = vrot.slane %v33, %v36
    %v40 = vunpack.c.l.b16 %v29
    %v41 = vunpack.c.l.b16 %v30
    %v42 = vpack.c.b16 %v41, %v40
    %v45 = vunpack.c.l.b16 %v31
    %v46 = vunpack.c.l.b16 %v32
    %v47 = vpack.c.b16 %v46, %v45
    %vm49 = vcmask 130048
    %v51 = vsel %vm49, %v42, 0
    %53 = vmatprep.subr.bf16.mxu0 0
    %54 = vmatpush1.bf16.msra.mxu0 %v47
    %55 = vmatprep.subr.bf16.mxu0 0
    %56 = vmatpush1.bf16.msra.mxu0 0
    %57 = vmatprep.subr.bf16.mxu0 0
    %58 = vmatpush1.bf16.msra.mxu0 0
    %59 = vmatprep.subr.bf16.mxu0 0
    %60 = vmatpush1.bf16.msra.mxu0 0
    %61 = vmatprep.subr.bf16.mxu0 0
    %62 = vmatpush1.bf16.msra.mxu0 0
    %63 = vmatprep.subr.bf16.mxu0 0
    %64 = vmatpush1.bf16.msra.mxu0 0
    %65 = vmatprep.subr.bf16.mxu0 0
    %66 = vmatpush1.bf16.msra.mxu0 0
    %67 = vmatprep.subr.bf16.mxu0 0
    %68 = vmatpush1.bf16.msra.mxu0 0
    %69 = vmatprep.subr.bf16.mxu0 0
    %70 = vmatpush1.bf16.msra.mxu0 0
    %71 = vmatprep.subr.bf16.mxu0 0
    %72 = vmatpush1.bf16.msra.mxu0 0
    %73 = vmatprep.subr.bf16.mxu0 0
    %74 = vmatpush1.bf16.msra.mxu0 0
    %75 = vmatprep.subr.bf16.mxu0 0
    %76 = vmatpush1.bf16.msra.mxu0 0
    %77 = vmatprep.subr.bf16.mxu0 0
    %78 = vmatpush1.bf16.msra.mxu0 0
    %79 = vmatprep.subr.bf16.mxu0 0
    %80 = vmatpush1.bf16.msra.mxu0 0
    %81 = vmatprep.subr.bf16.mxu0 0
    %82 = vmatpush1.bf16.msra.mxu0 0
    %83 = vmatprep.subr.bf16.mxu0 0
    %84 = vmatpush1.bf16.msra.mxu0 0
    %85 = vmatprep.mubr.bf16.mxu0 0
    %86 = vmatmul.mubr.bf16.gmra.mrb[0].mxu0 %v51
    %v87 = vpop.f32.mrb[0].mxu0
    %v88 = vadd.f32 %v37, %v87
    %v89 = vpop.f32.mrb[0].mxu0
    %v90 = vpop.f32.mrb[0].mxu0
    %v91 = vadd.f32 %v37, %v90
    %v92 = vpop.f32.mrb[0].mxu0
    %93 = vdwg.mxu0
    %v94 = vmax.f32 %v88, 0.0
    %v95 = vmax.f32 %v91, 0.0
    %v96 = vpack.c.bf16 %v95, %v94
    %s97 = scalar_lea.vmem [#allocation2], 64
    %v98 = vld [vmem:[%s97] sm:$0xf]
    %v99 = vld [vmem:[%s97 + $0x4] sm:$0xf]
    %v100 = vld [vmem:[%s97 + $0x8] sm:$0xf]
    %v101 = vld [vmem:[%s97 + $0xc] sm:$0xf]
    %v102 = vld [vmem:[%s97 + $0x10] sm:$0xf]
    %v103 = vld [vmem:[%s97 + $0x14] sm:$0xf]
    %v104 = vld [vmem:[%s97 + $0x18] sm:$0xf]
    %v105 = vld [vmem:[%s97 + $0x1c] sm:$0xf]
    %v106 = vld [vmem:[%s97 + $0x20] sm:$0xf]
    %v107 = vld [vmem:[%s97 + $0x24] sm:$0xf]
    %v108 = vld [vmem:[%s97 + $0x28] sm:$0xf]
    %v109 = vld [vmem:[%s97 + $0x2c] sm:$0xf]
    %v110 = vld [vmem:[%s97 + $0x30] sm:$0xf]
    %v111 = vld [vmem:[%s97 + $0x34] sm:$0xf]
    %v112 = vld [vmem:[%s97 + $0x38] sm:$0xf]
    %v113 = vld [vmem:[%s97 + $0x3c] sm:$0xf]
    %v114 = vld [vmem:[%s2 + $0x1] sm:$0x1]
    %v115 = vlaneseq
    %v116 = vshrl.u32 %v115, 7
    %v117 = vsub.s32 0, %v116
    %v118 = vrot.slane %v114, %v117
    %v135 = vunpack.c.l.b16 %v98
    %v136 = vunpack.c.l.b16 %v99
    %v137 = vunpack.c.l.b16 %v100
    %v138 = vunpack.c.l.b16 %v101
    %v139 = vunpack.c.l.b16 %v102
    %v140 = vunpack.c.l.b16 %v103
    %v141 = vunpack.c.l.b16 %v104
    %v142 = vunpack.c.l.b16 %v105
    %v143 = vunpack.c.l.b16 %v106
    %v144 = vunpack.c.l.b16 %v107
    %v145 = vunpack.c.l.b16 %v108
    %v146 = vunpack.c.l.b16 %v109
    %v147 = vunpack.c.l.b16 %v110
    %v148 = vunpack.c.l.b16 %v111
    %v149 = vunpack.c.l.b16 %v112
    %v150 = vunpack.c.l.b16 %v113
    %v151 = vpack.c.b16 %v136, %v135
    %v152 = vpack.c.b16 %v138, %v137
    %v153 = vpack.c.b16 %v140, %v139
    %v154 = vpack.c.b16 %v142, %v141
    %v155 = vpack.c.b16 %v144, %v143
    %v156 = vpack.c.b16 %v146, %v145
    %v157 = vpack.c.b16 %v148, %v147
    %v158 = vpack.c.b16 %v150, %v149
    %167 = vmatprep.subr.bf16.mxu0 0
    %168 = vmatpush1.bf16.msra.mxu0 %v151
    %169 = vmatprep.subr.bf16.mxu0 0
    %170 = vmatpush1.bf16.msra.mxu0 %v152
    %171 = vmatprep.subr.bf16.mxu0 0
    %172 = vmatpush1.bf16.msra.mxu0 %v153
    %173 = vmatprep.subr.bf16.mxu0 0
    %174 = vmatpush1.bf16.msra.mxu0 %v154
    %175 = vmatprep.subr.bf16.mxu0 0
    %176 = vmatpush1.bf16.msra.mxu0 %v155
    %177 = vmatprep.subr.bf16.mxu0 0
    %178 = vmatpush1.bf16.msra.mxu0 %v156
    %179 = vmatprep.subr.bf16.mxu0 0
    %180 = vmatpush1.bf16.msra.mxu0 %v157
    %181 = vmatprep.subr.bf16.mxu0 0
    %182 = vmatpush1.bf16.msra.mxu0 %v158
    %183 = vmatprep.subr.bf16.mxu0 0
    %184 = vmatpush1.bf16.msra.mxu0 0
    %185 = vmatprep.subr.bf16.mxu0 0
    %186 = vmatpush1.bf16.msra.mxu0 0
    %187 = vmatprep.subr.bf16.mxu0 0
    %188 = vmatpush1.bf16.msra.mxu0 0
    %189 = vmatprep.subr.bf16.mxu0 0
    %190 = vmatpush1.bf16.msra.mxu0 0
    %191 = vmatprep.subr.bf16.mxu0 0
    %192 = vmatpush1.bf16.msra.mxu0 0
    %193 = vmatprep.subr.bf16.mxu0 0
    %194 = vmatpush1.bf16.msra.mxu0 0
    %195 = vmatprep.subr.bf16.mxu0 0
    %196 = vmatpush1.bf16.msra.mxu0 0
    %197 = vmatprep.subr.bf16.mxu0 0
    %198 = vmatpush1.bf16.msra.mxu0 0
    %199 = vmatprep.mubr.bf16.mxu0 0
    %200 = vmatmul.mubr.bf16.gmra.mrb[0].mxu0 %v96
    %v201 = vpop.f32.mrb[0].mxu0
    %v202 = vadd.f32 %v118, %v201
    %v203 = vpop.f32.mrb[0].mxu0
    %v204 = vpop.f32.mrb[0].mxu0
    %v205 = vadd.f32 %v118, %v204
    %v206 = vpop.f32.mrb[0].mxu0
    %207 = vdwg.mxu0
    %v208 = vmax.f32 %v202, 0.0
    %v209 = vmax.f32 %v205, 0.0
    %v210 = vpack.c.bf16 %v209, %v208
    %s211 = scalar_lea.vmem [#allocation2], 128
    %v212 = vld [vmem:[%s211] sm:$0xf]
    %v213 = vld [vmem:[%s211 + $0x4] sm:$0xf]
    %v214 = vld [vmem:[%s211 + $0x8] sm:$0xf]
    %v215 = vld [vmem:[%s211 + $0xc] sm:$0xf]
    %v216 = vld [vmem:[%s211 + $0x10] sm:$0xf]
    %v217 = vld [vmem:[%s211 + $0x14] sm:$0xf]
    %v218 = vld [vmem:[%s211 + $0x18] sm:$0xf]
    %v219 = vld [vmem:[%s211 + $0x1c] sm:$0xf]
    %v220 = vld [vmem:[%s211 + $0x20] sm:$0xf]
    %v221 = vld [vmem:[%s211 + $0x24] sm:$0xf]
    %v222 = vld [vmem:[%s211 + $0x28] sm:$0xf]
    %v223 = vld [vmem:[%s211 + $0x2c] sm:$0xf]
    %v224 = vld [vmem:[%s211 + $0x30] sm:$0xf]
    %v225 = vld [vmem:[%s211 + $0x34] sm:$0xf]
    %v226 = vld [vmem:[%s211 + $0x38] sm:$0xf]
    %v227 = vld [vmem:[%s211 + $0x3c] sm:$0xf]
    %v228 = vld [vmem:[%s2 + $0x2] sm:$0x1]
    %v229 = vlaneseq
    %v230 = vshrl.u32 %v229, 7
    %v231 = vsub.s32 0, %v230
    %v232 = vrot.slane %v228, %v231
    %v249 = vunpack.c.l.b16 %v212
    %v250 = vunpack.c.l.b16 %v213
    %v251 = vunpack.c.l.b16 %v214
    %v252 = vunpack.c.l.b16 %v215
    %v253 = vunpack.c.l.b16 %v216
    %v254 = vunpack.c.l.b16 %v217
    %v255 = vunpack.c.l.b16 %v218
    %v256 = vunpack.c.l.b16 %v219
    %v257 = vunpack.c.l.b16 %v220
    %v258 = vunpack.c.l.b16 %v221
    %v259 = vunpack.c.l.b16 %v222
    %v260 = vunpack.c.l.b16 %v223
    %v261 = vunpack.c.l.b16 %v224
    %v262 = vunpack.c.l.b16 %v225
    %v263 = vunpack.c.l.b16 %v226
    %v264 = vunpack.c.l.b16 %v227
    %v265 = vpack.c.b16 %v250, %v249
    %v266 = vpack.c.b16 %v252, %v251
    %v267 = vpack.c.b16 %v254, %v253
    %v268 = vpack.c.b16 %v256, %v255
    %v269 = vpack.c.b16 %v258, %v257
    %v270 = vpack.c.b16 %v260, %v259
    %v271 = vpack.c.b16 %v262, %v261
    %v272 = vpack.c.b16 %v264, %v263
    %281 = vmatprep.subr.bf16.mxu0 0
    %282 = vmatpush1.bf16.msra.mxu0 %v265
    %283 = vmatprep.subr.bf16.mxu0 0
    %284 = vmatpush1.bf16.msra.mxu0 %v266
    %285 = vmatprep.subr.bf16.mxu0 0
    %286 = vmatpush1.bf16.msra.mxu0 %v267
    %287 = vmatprep.subr.bf16.mxu0 0
    %288 = vmatpush1.bf16.msra.mxu0 %v268
    %289 = vmatprep.subr.bf16.mxu0 0
    %290 = vmatpush1.bf16.msra.mxu0 %v269
    %291 = vmatprep.subr.bf16.mxu0 0
    %292 = vmatpush1.bf16.msra.mxu0 %v270
    %293 = vmatprep.subr.bf16.mxu0 0
    %294 = vmatpush1.bf16.msra.mxu0 %v271
    %295 = vmatprep.subr.bf16.mxu0 0
    %296 = vmatpush1.bf16.msra.mxu0 %v272
    %297 = vmatprep.subr.bf16.mxu0 0
    %298 = vmatpush1.bf16.msra.mxu0 0
    %299 = vmatprep.subr.bf16.mxu0 0
    %300 = vmatpush1.bf16.msra.mxu0 0
    %301 = vmatprep.subr.bf16.mxu0 0
    %302 = vmatpush1.bf16.msra.mxu0 0
    %303 = vmatprep.subr.bf16.mxu0 0
    %304 = vmatpush1.bf16.msra.mxu0 0
    %305 = vmatprep.subr.bf16.mxu0 0
    %306 = vmatpush1.bf16.msra.mxu0 0
    %307 = vmatprep.subr.bf16.mxu0 0
    %308 = vmatpush1.bf16.msra.mxu0 0
    %309 = vmatprep.subr.bf16.mxu0 0
    %310 = vmatpush1.bf16.msra.mxu0 0
    %311 = vmatprep.subr.bf16.mxu0 0
    %312 = vmatpush1.bf16.msra.mxu0 0
    %313 = vmatprep.mubr.bf16.mxu0 0
    %314 = vmatmul.mubr.bf16.gmra.mrb[0].mxu0 %v210
    %v315 = vpop.f32.mrb[0].mxu0
    %v316 = vadd.f32 %v232, %v315
    %v317 = vpop.f32.mrb[0].mxu0
    %v318 = vpop.f32.mrb[0].mxu0
    %v319 = vadd.f32 %v232, %v318
    %v320 = vpop.f32.mrb[0].mxu0
    %321 = vdwg.mxu0
    %vm322 = vcmask 31744
    %323 = vst.msk [vmem:[%s3] sm:$0xff] %vm322, %v316
    %324 = vst.msk [vmem:[%s3 + $0x8] sm:$0xff] %vm322, %v319
    // Predicated region
    $region18: #{linear_qnet_forward.1} parent=1 // pred_check
      _
    $region19: #{linear_qnet_forward.1} parent=1 // pred_check_branch
      %326 = sbr.rel (0) target = $region21
    $region20: #{linear_qnet_forward.1} parent=1 // pred_region
      _
    $region21: #{linear_qnet_forward.1} parent=1 // pred_fallthru
      _
    // Predicated region
    $region22: #{linear_qnet_forward.1} parent=1 // pred_check
      _
    $region23: #{linear_qnet_forward.1} parent=1 // pred_check_branch
      %328 = sbr.rel (0) target = $region25
    $region24: #{linear_qnet_forward.1} parent=1 // pred_region
      _
    $region25: #{linear_qnet_forward.1} parent=1 // pred_fallthru
      _
    %329 = vsyncpa [#allocation3], 1

</llo_original>
